<compile_context>
chip_gen: v5e
topology: v5e:2x2
jax: 0.10.0
libtpu: 0.0.40
codegen_flags: <defaults>
</compile_context>

<pallas_src>
import functools

import jax
import jax.numpy as jnp
import numpy as np
from jax.experimental import pallas as pl
from jax.experimental.pallas import tpu as pltpu


def _qfocal_kernel(pred_ref, label_ref, out_ref, *, gamma, alpha, n_rows,
                   block_rows):
    x = pred_ref[...].astype(jnp.float32)   # no-op for f32 inputs, upcast for bf16
    y = label_ref[...].astype(jnp.float32)

    # One shared transcendental: e = exp(-|x|).
    e = jnp.exp(-jnp.abs(x))
    # Numerically-stable BCE-with-logits: max(x,0) - x*y + log(1 + exp(-|x|)).
    bce = jnp.maximum(x, 0.0) - x * y + jnp.log1p(e)
    # sigmoid(x) = where(x >= 0, 1, e) / (1 + e)   (reuses e, no second exp).
    p = jnp.where(x >= 0.0, 1.0, e) / (1.0 + e)

    alpha_factor = y * alpha + (1.0 - y) * (1.0 - alpha)

    d = jnp.abs(y - p)
    if gamma == 1.0:
        mod = d
    elif gamma == 1.5:
        mod = d * jnp.sqrt(d)
    elif gamma == 2.0:
        mod = d * d
    else:
        # Generic static gamma, guarded against log(0).
        mod = jnp.where(d > 0.0,
                        jnp.exp(gamma * jnp.log(jnp.maximum(d, 1e-30))), 0.0)

    loss = bce * alpha_factor * mod

    # Mask rows past the end of the array in the (possibly partial) last block.
    if n_rows % block_rows != 0:
        row = (pl.program_id(0) * block_rows
               + jax.lax.broadcasted_iota(jnp.int32, loss.shape, 0))
        loss = jnp.where(row < n_rows, loss, 0.0)

    # Lane-resident partial: fold the block's rows down to an (8, C) tile with
    # VPU adds only. The cross-lane reduce and /C happen once in the wrapper.
    partial = jnp.sum(loss.reshape(block_rows // 8, 8, loss.shape[-1]), axis=0)
    out_ref[0] = partial


def qfocal_loss(pred, label, gamma=1.5, alpha=0.25, *, block_rows=None):
    """Pallas TPU implementation of QFocalLoss.forward. Returns a scalar."""
    assert pred.shape == label.shape and pred.ndim == 2
    n, c = pred.shape

    if block_rows is None:
        # ~2 MiB of rows per input block: multi-MiB streaming tiles, but small
        # enough that 2 inputs x 2 pipeline buffers stay well inside scoped
        # VMEM on v5e/v6e/v7x. Rounded to a sublane multiple of 8.
        target = max(8, ((2 * 1024 * 1024) // (c * 4)) // 8 * 8)
        block_rows = int(min(target, pl.cdiv(n, 8) * 8))
    assert block_rows % 8 == 0
    num_blocks = pl.cdiv(n, block_rows)

    kernel = functools.partial(
        _qfocal_kernel, gamma=float(gamma), alpha=float(alpha),
        n_rows=n, block_rows=block_rows)

    partials = pl.pallas_call(
        kernel,
        out_shape=jax.ShapeDtypeStruct((num_blocks, 8, c), jnp.float32),
        grid_spec=pltpu.PrefetchScalarGridSpec(
            num_scalar_prefetch=0,
            grid=(num_blocks,),
            in_specs=[
                pl.BlockSpec((block_rows, c), lambda i: (i, 0)),
                pl.BlockSpec((block_rows, c), lambda i: (i, 0)),
            ],
            out_specs=pl.BlockSpec((1, 8, c), lambda i: (i, 0, 0)),
        ),
        compiler_params=pltpu.CompilerParams(
            # Every block is an independent partial -> megacore-shardable (v7x).
            dimension_semantics=("parallel",),
            vmem_limit_bytes=32 * 1024 * 1024,
        ),
    )(pred, label)

    # mean over dim 1 then sum over dim 0  ==  sum(all partials) / C.
    return jnp.sum(partials) / c


def _qfocal_loss_ref(pred, label, gamma=1.5, alpha=0.25):
    """Pure-JAX reference mirroring the PyTorch module."""
    pred = pred.astype(jnp.float32)
    label = label.astype(jnp.float32)
    bce = (jnp.maximum(pred, 0.0) - pred * label
           + jnp.log1p(jnp.exp(-jnp.abs(pred))))
    p = jax.nn.sigmoid(pred)
    af = label * alpha + (1.0 - label) * (1.0 - alpha)
    mf = jnp.abs(label - p) ** gamma
    loss = bce * af * mf
    return loss.mean(1).sum()


if __name__ == "__main__":
    key = jax.random.PRNGKey(0)
    k1, k2, k3, k4 = jax.random.split(key, 4)

    # Small (8,128)-aligned case.
    N, C = 32, 128
    pred = jax.random.normal(k1, (N, C), dtype=jnp.float32)
    label = jax.random.uniform(k2, (N, C), dtype=jnp.float32)  # soft labels in [0,1]
    out = jax.block_until_ready(qfocal_loss(pred, label))
    ref = jax.block_until_ready(_qfocal_loss_ref(pred, label))
    np.testing.assert_allclose(np.asarray(out), np.asarray(ref),
                               rtol=1e-4, atol=1e-5)

    # Ragged-N case (exercises the pl.cdiv grid + in-kernel row mask).
    N2, C2 = 37, 128
    pred2 = jax.random.normal(k3, (N2, C2), dtype=jnp.float32)
    label2 = jax.random.uniform(k4, (N2, C2), dtype=jnp.float32)
    out2 = jax.block_until_ready(qfocal_loss(pred2, label2))
    ref2 = jax.block_until_ready(_qfocal_loss_ref(pred2, label2))
    np.testing.assert_allclose(np.asarray(out2), np.asarray(ref2),
                               rtol=1e-4, atol=1e-5)

    print("KERNEL_OK")
</pallas_src>

<mosaic_0001>
module attributes {stable_mosaic.version = 11 : i64} {
  func.func @_qfocal_kernel(%arg0: i32, %arg1: memref<32x128xf32, #tpu.memory_space<vmem>>, %arg2: memref<32x128xf32, #tpu.memory_space<vmem>>, %arg3: memref<1x8x128xf32, #tpu.memory_space<vmem>>) attributes {dimension_semantics = [#tpu.dimension_semantics<parallel>], iteration_bounds = array<i64: 1>, scalar_prefetch = 0 : i64, scratch_operands = 0 : i64, tpu.core_type = #tpu.core_type<tc>, window_params = [{transform_indices = @transform_0, window_bounds = array<i64: 32, 128>}, {transform_indices = @transform_1, window_bounds = array<i64: 32, 128>}, {transform_indices = @transform_2, window_bounds = array<i64: 1, 8, 128>}]} {
    %c0 = arith.constant 0 : index
    %c0_0 = arith.constant 0 : index
    %0 = vector.load %arg1[%c0, %c0_0] : memref<32x128xf32, #tpu.memory_space<vmem>>, vector<32x128xf32>
    %c0_1 = arith.constant 0 : index
    %c0_2 = arith.constant 0 : index
    %1 = vector.load %arg2[%c0_1, %c0_2] : memref<32x128xf32, #tpu.memory_space<vmem>>, vector<32x128xf32>
    %2 = math.absf %0 : vector<32x128xf32>
    %cst = arith.constant 0.000000e+00 : f32
    %3 = vector.broadcast %cst : f32 to vector<32x128xf32>
    %4 = arith.subf %3, %2 : vector<32x128xf32>
    %5 = math.exp %4 : vector<32x128xf32>
    %cst_3 = arith.constant 0.000000e+00 : f32
    %6 = vector.broadcast %cst_3 : f32 to vector<32x128xf32>
    %7 = arith.maximumf %0, %6 : vector<32x128xf32>
    %8 = arith.mulf %0, %1 : vector<32x128xf32>
    %9 = arith.subf %7, %8 : vector<32x128xf32>
    %10 = math.log1p %5 : vector<32x128xf32>
    %11 = arith.addf %9, %10 : vector<32x128xf32>
    %cst_4 = arith.constant 0.000000e+00 : f32
    %12 = vector.broadcast %cst_4 : f32 to vector<32x128xf32>
    %13 = arith.cmpf oge, %0, %12 : vector<32x128xf32>
    %cst_5 = arith.constant 1.000000e+00 : f32
    %14 = vector.broadcast %cst_5 : f32 to vector<32x128xf32>
    %15 = arith.select %13, %14, %5 : vector<32x128xi1>, vector<32x128xf32>
    %cst_6 = arith.constant 1.000000e+00 : f32
    %16 = vector.broadcast %cst_6 : f32 to vector<32x128xf32>
    %17 = arith.addf %16, %5 : vector<32x128xf32>
    %18 = arith.divf %15, %17 : vector<32x128xf32>
    %cst_7 = arith.constant 2.500000e-01 : f32
    %19 = vector.broadcast %cst_7 : f32 to vector<32x128xf32>
    %20 = arith.mulf %1, %19 : vector<32x128xf32>
    %cst_8 = arith.constant 1.000000e+00 : f32
    %21 = vector.broadcast %cst_8 : f32 to vector<32x128xf32>
    %22 = arith.subf %21, %1 : vector<32x128xf32>
    %cst_9 = arith.constant 7.500000e-01 : f32
    %23 = vector.broadcast %cst_9 : f32 to vector<32x128xf32>
    %24 = arith.mulf %22, %23 : vector<32x128xf32>
    %25 = arith.addf %20, %24 : vector<32x128xf32>
    %26 = arith.subf %1, %18 : vector<32x128xf32>
    %27 = math.absf %26 : vector<32x128xf32>
    %28 = math.sqrt %27 : vector<32x128xf32>
    %29 = arith.mulf %27, %28 : vector<32x128xf32>
    %30 = arith.mulf %11, %25 : vector<32x128xf32>
    %31 = arith.mulf %30, %29 : vector<32x128xf32>
    %32 = vector.shape_cast %31 : vector<32x128xf32> to vector<4x8x128xf32>
    %cst_10 = arith.constant dense<0.000000e+00> : vector<8x128xf32>
    %33 = vector.multi_reduction <add>, %32, %cst_10 [0] : vector<4x8x128xf32> to vector<8x128xf32>
    %c0_11 = arith.constant 0 : index
    %c0_12 = arith.constant 0 : index
    %c0_13 = arith.constant 0 : index
    %34 = vector.load %arg3[%c0_11, %c0_12, %c0_13] : memref<1x8x128xf32, #tpu.memory_space<vmem>>, vector<1x8x128xf32>
    %35 = vector.shape_cast %34 : vector<1x8x128xf32> to vector<8x128xf32>
    %36 = vector.shape_cast %33 : vector<8x128xf32> to vector<1x8x128xf32>
    tpu.vector_store %arg3[%c0_11, %c0_12, %c0_13], %36 {strides = array<i32>} : memref<1x8x128xf32, #tpu.memory_space<vmem>>, vector<1x8x128xf32>,
    return
  }
  func.func @transform_0(%arg0: i32) -> (i32, i32) {
    %c0_i32 = arith.constant 0 : i32
    %c0_i32_0 = arith.constant 0 : i32
    return %arg0, %c0_i32 : i32, i32
  }
  func.func @transform_1(%arg0: i32) -> (i32, i32) {
    %c0_i32 = arith.constant 0 : i32
    %c0_i32_0 = arith.constant 0 : i32
    return %arg0, %c0_i32 : i32, i32
  }
  func.func @transform_2(%arg0: i32) -> (i32, i32, i32) {
    %c0_i32 = arith.constant 0 : i32
    %c0_i32_0 = arith.constant 0 : i32
    %c0_i32_1 = arith.constant 0 : i32
    return %arg0, %c0_i32, %c0_i32_0 : i32, i32, i32
  }
}

</mosaic_0001>

<llo_original>
// kernel: tpu_custom_call.1
$region0: #{tpu_custom_call.1}
  #allocation0 [shape = 'u32[]', space=smem, size = 0x4, offset = 0x4, fixed_abs, tag = 'smem constant byte address 0x4 - core index']
  #allocation1 [shape = 'u32[72,128]{1,0:T(1,128)}', space=vmem, size = 0x9000, scoped, tag = 'internal scratch']
  %s0 = inlined_call_operand.hbm [shape: f32[32,128], index: 0, kind: input, shape index: {}]
  %s1 = inlined_call_operand.hbm [shape: f32[32,128], index: 1, kind: input, shape index: {}]
  %s2 = inlined_call_operand.hbm [shape: f32[1,8,128], index: 2, kind: output, shape index: {}]
  %s3 = sld [smem:[#allocation0]]
  $region26: #{tpu_custom_call.1} parent=0
    _
  %s5 = ssub.s32 1, %s3
  %s6 = scalar_select 0, %s5, %s3
  $region1: #{tpu_custom_call.1} parent=0
    #allocation2 [shape = 'u8[16384]{0}', space=vmem, size = 0x4000, scoped, tag = 'input window, operand 0, single buffered']
    #allocation3 [shape = 's32[1]{0}', space=sflag, size = 0x4, scoped, tag = 'scoped memory for tpu_custom_call.1']
    #allocation4 [shape = 's32[1]{0}', space=sflag, size = 0x4, scoped, tag = 'scoped memory for tpu_custom_call.1']
    #allocation5 [shape = 'u8[16384]{0}', space=vmem, size = 0x4000, scoped, tag = 'input window, operand 1, single buffered']
    #allocation6 [shape = 's32[1]{0}', space=sflag, size = 0x4, scoped, tag = 'scoped memory for tpu_custom_call.1']
    #allocation7 [shape = 'u8[4096]{0}', space=vmem, size = 0x1000, scoped, tag = 'output window, operand 0, single buffered']
    %7 = vsyncpa [#allocation3], 0
    %8 = vsyncpa [#allocation6], 0
    %9 = vsyncpa [#allocation4], 0
    // Predicated region
    $region2: #{tpu_custom_call.1} parent=1 // pred_check
      _
    $region3: #{tpu_custom_call.1} parent=1 // pred_check_branch
      %11 = sbr.rel (0) target = $region5
    $region4: #{tpu_custom_call.1} parent=1 // pred_region
      %13 = vsyncadd [#allocation3], 0
      %s14 = sshll.u32 %s0, 4
      %s15 = int_to_ptr.hbm [resolvable:$true] %s14
      %s16 = sshll.u32 [#allocation2], 4
      %s17 = int_to_ptr.vmem [resolvable:$true] %s16
      %22 = dma.hbm_to_vmem [thread:$0]  %s15, 512, %s17, [#allocation3], 128, 128, 8
    $region5: #{tpu_custom_call.1} parent=1 // pred_fallthru
      _
    // Predicated region
    $region6: #{tpu_custom_call.1} parent=1 // pred_check
      _
    $region7: #{tpu_custom_call.1} parent=1 // pred_check_branch
      %24 = sbr.rel (0) target = $region9
    $region8: #{tpu_custom_call.1} parent=1 // pred_region
      %26 = vsyncadd [#allocation6], 0
      %s27 = sshll.u32 %s1, 4
      %s28 = int_to_ptr.hbm [resolvable:$true] %s27
      %s29 = sshll.u32 [#allocation5], 4
      %s30 = int_to_ptr.vmem [resolvable:$true] %s29
      %35 = dma.hbm_to_vmem [thread:$0]  %s28, 512, %s30, [#allocation6], 128, 128, 8
    $region9: #{tpu_custom_call.1} parent=1 // pred_fallthru
      _
    // Predicated region
    $region10: #{tpu_custom_call.1} parent=1 // pred_check
      _
    $region11: #{tpu_custom_call.1} parent=1 // pred_check_branch
      %37 = sbr.rel (0) target = $region13
    $region12: #{tpu_custom_call.1} parent=1 // pred_region
      %39 = dma.done [#allocation3], 512
    $region13: #{tpu_custom_call.1} parent=1 // pred_fallthru
      _
    // Predicated region
    $region14: #{tpu_custom_call.1} parent=1 // pred_check
      _
    $region15: #{tpu_custom_call.1} parent=1 // pred_check_branch
      %41 = sbr.rel (0) target = $region17
    $region16: #{tpu_custom_call.1} parent=1 // pred_region
      %43 = dma.done [#allocation6], 512
    $region17: #{tpu_custom_call.1} parent=1 // pred_fallthru
      _
    %v44 = vld [vmem:[#allocation2] sm:$0xff]
    %v45 = vld [vmem:[#allocation2 + $0x8] sm:$0xff]
    %v46 = vld [vmem:[#allocation2 + $0x10] sm:$0xff]
    %v47 = vld [vmem:[#allocation2 + $0x18] sm:$0xff]
    %v48 = vld [vmem:[#allocation5] sm:$0xff]
    %v49 = vld [vmem:[#allocation5 + $0x8] sm:$0xff]
    %v50 = vld [vmem:[#allocation5 + $0x10] sm:$0xff]
    %v51 = vld [vmem:[#allocation5 + $0x18] sm:$0xff]
    %v52 = vand.u32 2147483647, %v44
    %v53 = vand.u32 2147483647, %v45
    %v54 = vand.u32 2147483647, %v46
    %v55 = vand.u32 2147483647, %v47
    %v56 = vsub.f32 0.0, %v52
    %v57 = vsub.f32 0.0, %v53
    %v58 = vsub.f32 0.0, %v54
    %v59 = vsub.f32 0.0, %v55
    %v60 = vmul.f32 %v56, 1.442695
    %v61 = vpow.pop %v60
    %v62 = vmul.f32 %v57, 1.442695
    %v63 = vpow.pop %v62
    %v64 = vmul.f32 %v58, 1.442695
    %v65 = vpow.pop %v64
    %v66 = vmul.f32 %v59, 1.442695
    %v67 = vpow.pop %v66
    %v68 = vmax.f32 %v44, 0.0
    %v69 = vmax.f32 %v45, 0.0
    %v70 = vmax.f32 %v46, 0.0
    %v71 = vmax.f32 %v47, 0.0
    %v72 = vmul.f32 %v44, %v48
    %v73 = vmul.f32 %v45, %v49
    %v74 = vmul.f32 %v46, %v50
    %v75 = vmul.f32 %v47, %v51
    %v76 = vsub.f32 %v68, %v72
    %v77 = vsub.f32 %v69, %v73
    %v78 = vsub.f32 %v70, %v74
    %v79 = vsub.f32 %v71, %v75
    %v80 = vadd.f32 %v61, 1.0
    %v81 = vlog2.pop %v80
    %v82 = vmul.f32 %v81, 0.6931472
    %v83 = vmul.f32 -0.5, %v61
    %v84 = vadd.f32 %v83, 1.0
    %v85 = vmul.f32 %v84, %v61
    %v86 = vand.u32 2147483647, %v61
    %vm87 = vcmp.lt.f32.partialorder %v86, 0.0004427343
    %v88 = vsel %vm87, %v85, %v82
    %v89 = vadd.f32 %v63, 1.0
    %v90 = vlog2.pop %v89
    %v91 = vmul.f32 %v90, 0.6931472
    %v92 = vmul.f32 -0.5, %v63
    %v93 = vadd.f32 %v92, 1.0
    %v94 = vmul.f32 %v93, %v63
    %v95 = vand.u32 2147483647, %v63
    %vm96 = vcmp.lt.f32.partialorder %v95, 0.0004427343
    %v97 = vsel %vm96, %v94, %v91
    %v98 = vadd.f32 %v65, 1.0
    %v99 = vlog2.pop %v98
    %v100 = vmul.f32 %v99, 0.6931472
    %v101 = vmul.f32 -0.5, %v65
    %v102 = vadd.f32 %v101, 1.0
    %v103 = vmul.f32 %v102, %v65
    %v104 = vand.u32 2147483647, %v65
    %vm105 = vcmp.lt.f32.partialorder %v104, 0.0004427343
    %v106 = vsel %vm105, %v103, %v100
    %v107 = vadd.f32 %v67, 1.0
    %v108 = vlog2.pop %v107
    %v109 = vmul.f32 %v108, 0.6931472
    %v110 = vmul.f32 -0.5, %v67
    %v111 = vadd.f32 %v110, 1.0
    %v112 = vmul.f32 %v111, %v67
    %v113 = vand.u32 2147483647, %v67
    %vm114 = vcmp.lt.f32.partialorder %v113, 0.0004427343
    %v115 = vsel %vm114, %v112, %v109
    %v116 = vadd.f32 %v76, %v88
    %v117 = vadd.f32 %v77, %v97
    %v118 = vadd.f32 %v78, %v106
    %v119 = vadd.f32 %v79, %v115
    %vm120 = vcmp.ge.f32.partialorder %v44, 0.0
    %vm121 = vcmp.ge.f32.partialorder %v45, 0.0
    %vm122 = vcmp.ge.f32.partialorder %v46, 0.0
    %vm123 = vcmp.ge.f32.partialorder %v47, 0.0
    %v124 = vsel %vm120, 1.0, %v61
    %v125 = vsel %vm121, 1.0, %v63
    %v126 = vsel %vm122, 1.0, %v65
    %v127 = vsel %vm123, 1.0, %v67
    %v128 = vadd.f32 %v61, 1.0
    %v129 = vadd.f32 %v63, 1.0
    %v130 = vadd.f32 %v65, 1.0
    %v131 = vadd.f32 %v67, 1.0
    %v132 = vrcp.pop %v128
    %v133 = vmul.f32 %v128, %v132
    %v134 = vsub.f32 1.0, %v133
    %v135 = vmul.f32 %v132, %v134
    %v136 = vadd.f32 %v132, %v135
    %vm137 = vweird.f32 %v128
    %vm138 = vweird.f32 %v132
    %vm139 = vmor %vm137, %vm138
    %v140 = vsel %vm139, %v132, %v136
    %v141 = vand.u32 2147483647, %v128
    %vm142 = vcmp.eq.f32.partialorder %v141, 8.507059e+37
    %v143 = vand.u32 %v128, 2147483648
    %v144 = vor.u32 1.1754944e-38, %v143
    %v145 = vsel %vm142, %v144, %v140
    %v146 = vmul.f32 %v124, %v145
    %v147 = vrcp.pop %v129
    %v148 = vmul.f32 %v129, %v147
    %v149 = vsub.f32 1.0, %v148
    %v150 = vmul.f32 %v147, %v149
    %v151 = vadd.f32 %v147, %v150
    %vm152 = vweird.f32 %v129
    %vm153 = vweird.f32 %v147
    %vm154 = vmor %vm152, %vm153
    %v155 = vsel %vm154, %v147, %v151
    %v156 = vand.u32 2147483647, %v129
    %vm157 = vcmp.eq.f32.partialorder %v156, 8.507059e+37
    %v158 = vand.u32 %v129, 2147483648
    %v159 = vor.u32 1.1754944e-38, %v158
    %v160 = vsel %vm157, %v159, %v155
    %v161 = vmul.f32 %v125, %v160
    %v162 = vrcp.pop %v130
    %v163 = vmul.f32 %v130, %v162
    %v164 = vsub.f32 1.0, %v163
    %v165 = vmul.f32 %v162, %v164
    %v166 = vadd.f32 %v162, %v165
    %vm167 = vweird.f32 %v130
    %vm168 = vweird.f32 %v162
    %vm169 = vmor %vm167, %vm168
    %v170 = vsel %vm169, %v162, %v166
    %v171 = vand.u32 2147483647, %v130
    %vm172 = vcmp.eq.f32.partialorder %v171, 8.507059e+37
    %v173 = vand.u32 %v130, 2147483648
    %v174 = vor.u32 1.1754944e-38, %v173
    %v175 = vsel %vm172, %v174, %v170
    %v176 = vmul.f32 %v126, %v175
    %v177 = vrcp.pop %v131
    %v178 = vmul.f32 %v131, %v177
    %v179 = vsub.f32 1.0, %v178
    %v180 = vmul.f32 %v177, %v179
    %v181 = vadd.f32 %v177, %v180
    %vm182 = vweird.f32 %v131
    %vm183 = vweird.f32 %v177
    %vm184 = vmor %vm182, %vm183
    %v185 = vsel %vm184, %v177, %v181
    %v186 = vand.u32 2147483647, %v131
    %vm187 = vcmp.eq.f32.partialorder %v186, 8.507059e+37
    %v188 = vand.u32 %v131, 2147483648
    %v189 = vor.u32 1.1754944e-38, %v188
    %v190 = vsel %vm187, %v189, %v185
    %v191 = vmul.f32 %v127, %v190
    %v192 = vmul.f32 %v48, 0.25
    %v193 = vmul.f32 %v49, 0.25
    %v194 = vmul.f32 %v50, 0.25
    %v195 = vmul.f32 %v51, 0.25
    %v196 = vsub.f32 1.0, %v48
    %v197 = vsub.f32 1.0, %v49
    %v198 = vsub.f32 1.0, %v50
    %v199 = vsub.f32 1.0, %v51
    %v200 = vmul.f32 %v196, 0.75
    %v201 = vmul.f32 %v197, 0.75
    %v202 = vmul.f32 %v198, 0.75
    %v203 = vmul.f32 %v199, 0.75
    %v204 = vadd.f32 %v192, %v200
    %v205 = vadd.f32 %v193, %v201
    %v206 = vadd.f32 %v194, %v202
    %v207 = vadd.f32 %v195, %v203
    %v208 = vsub.f32 %v48, %v146
    %v209 = vsub.f32 %v49, %v161
    %v210 = vsub.f32 %v50, %v176
    %v211 = vsub.f32 %v51, %v191
    %v212 = vand.u32 2147483647, %v208
    %v213 = vand.u32 2147483647, %v209
    %v214 = vand.u32 2147483647, %v210
    %v215 = vand.u32 2147483647, %v211
    %v216 = vrsqrt.pop %v212
    %v217 = vmul.f32 %v216, %v212
    %v218 = vmul.f32 %v217, %v216
    %v219 = vmul.f32 0.5, %v218
    %v220 = vsub.f32 1.5, %v219
    %v221 = vmul.f32 %v216, %v220
    %v222 = vmul.f32 %v212, %v221
    %vm223 = vcmp.eq.f32.partialorder %v212, inf
    %v224 = vsel %vm223, %v212, %v222
    %vm225 = vcmp.eq.f32.partialorder %v212, 0.0
    %v226 = vand.u32 %v212, 2147483648
    %v227 = vsel %vm225, %v226, %v224
    %v228 = vrsqrt.pop %v213
    %v229 = vmul.f32 %v228, %v213
    %v230 = vmul.f32 %v229, %v228
    %v231 = vmul.f32 0.5, %v230
    %v232 = vsub.f32 1.5, %v231
    %v233 = vmul.f32 %v228, %v232
    %v234 = vmul.f32 %v213, %v233
    %vm235 = vcmp.eq.f32.partialorder %v213, inf
    %v236 = vsel %vm235, %v213, %v234
    %vm237 = vcmp.eq.f32.partialorder %v213, 0.0
    %v238 = vand.u32 %v213, 2147483648
    %v239 = vsel %vm237, %v238, %v236
    %v240 = vrsqrt.pop %v214
    %v241 = vmul.f32 %v240, %v214
    %v242 = vmul.f32 %v241, %v240
    %v243 = vmul.f32 0.5, %v242
    %v244 = vsub.f32 1.5, %v243
    %v245 = vmul.f32 %v240, %v244
    %v246 = vmul.f32 %v214, %v245
    %vm247 = vcmp.eq.f32.partialorder %v214, inf
    %v248 = vsel %vm247, %v214, %v246
    %vm249 = vcmp.eq.f32.partialorder %v214, 0.0
    %v250 = vand.u32 %v214, 2147483648
    %v251 = vsel %vm249, %v250, %v248
    %v252 = vrsqrt.pop %v215
    %v253 = vmul.f32 %v252, %v215
    %v254 = vmul.f32 %v253, %v252
    %v255 = vmul.f32 0.5, %v254
    %v256 = vsub.f32 1.5, %v255
    %v257 = vmul.f32 %v252, %v256
    %v258 = vmul.f32 %v215, %v257
    %vm259 = vcmp.eq.f32.partialorder %v215, inf
    %v260 = vsel %vm259, %v215, %v258
    %vm261 = vcmp.eq.f32.partialorder %v215, 0.0
    %v262 = vand.u32 %v215, 2147483648
    %v263 = vsel %vm261, %v262, %v260
    %v264 = vmul.f32 %v212, %v227
    %v265 = vmul.f32 %v213, %v239
    %v266 = vmul.f32 %v214, %v251
    %v267 = vmul.f32 %v215, %v263
    %v268 = vmul.f32 %v116, %v204
    %v269 = vmul.f32 %v117, %v205
    %v270 = vmul.f32 %v118, %v206
    %v271 = vmul.f32 %v119, %v207
    %v272 = vmul.f32 %v268, %v264
    %v273 = vmul.f32 %v269, %v265
    %v274 = vmul.f32 %v270, %v266
    %v275 = vmul.f32 %v271, %v267
    %v276 = vadd.f32 %v272, %v273
    %v277 = vadd.f32 %v276, %v274
    %v278 = vadd.f32 %v277, %v275
    %279 = vst [vmem:[#allocation7] sm:$0xff] %v278
    // Predicated region
    $region18: #{tpu_custom_call.1} parent=1 // pred_check
      _
    $region19: #{tpu_custom_call.1} parent=1 // pred_check_branch
      %281 = sbr.rel (0) target = $region21
    $region20: #{tpu_custom_call.1} parent=1 // pred_region
      %283 = vsyncadd [#allocation4], 0
      %s285 = sshll.u32 [#allocation7], 4
      %s286 = int_to_ptr.vmem [resolvable:$true] %s285
      %s287 = sshll.u32 %s2, 4
      %s288 = int_to_ptr.hbm [resolvable:$true] %s287
      %290 = dma.vmem_to_hbm [thread:$0]  %s286, 128, %s288, [#allocation4]
    $region21: #{tpu_custom_call.1} parent=1 // pred_fallthru
      _
    // Predicated region
    $region22: #{tpu_custom_call.1} parent=1 // pred_check
      _
    $region23: #{tpu_custom_call.1} parent=1 // pred_check_branch
      %292 = sbr.rel (0) target = $region25
    $region24: #{tpu_custom_call.1} parent=1 // pred_region
      %294 = dma.done [#allocation4], 128
    $region25: #{tpu_custom_call.1} parent=1 // pred_fallthru
      _
    %295 = vsyncpa [#allocation3], 1
    %296 = vsyncpa [#allocation6], 1
    %297 = vsyncpa [#allocation4], 1

</llo_original>
